<compile_context>
chip_gen: v7x
topology: tpu7x:2x2x1
jax: 0.10.0
libtpu: 0.0.40
codegen_flags: <defaults>
</compile_context>

<pallas_src>
import jax
import jax.numpy as jnp
from jax.experimental import pallas as pl
from jax.experimental.pallas import tpu as pltpu

POOL = 4  # nn.AvgPool2d(4)


# ----------------------------------------------------------------------------
# Constant 0/1 operators (built once in the wrapper, streamed once per core).
# ----------------------------------------------------------------------------
def _operators(H, W):
    Hp, Wp = H // POOL, W // POOL
    f32 = jnp.float32
    # AvgPool2d(4) as two matmuls with 0/1 block-sum matrices (scaled by 1/16
    # inside the kernel).
    pA = (jnp.arange(H)[None, :] // POOL == jnp.arange(Hp)[:, None]).astype(f32)  # (Hp, H)
    pB = (jnp.arange(W)[:, None] // POOL == jnp.arange(Wp)[None, :]).astype(f32)  # (W, Wp)
    # Zero-padded +-1 shift operators == the four 3x3 difference convs
    # (padding=1) of the PyTorch module.
    su = jnp.eye(Hp, k=-1, dtype=f32)   # su @ x -> x[i-1, j] (0-pad)  "up"
    sd = jnp.eye(Hp, k=1, dtype=f32)    # sd @ x -> x[i+1, j] (0-pad)  "down"
    sl = jnp.eye(Wp, k=1, dtype=f32)    # x @ sl -> x[i, j-1] (0-pad)  "left"
    sr = jnp.eye(Wp, k=-1, dtype=f32)   # x @ sr -> x[i, j+1] (0-pad)  "right"
    return pA, pB, su, sd, sl, sr


# ----------------------------------------------------------------------------
# Whole-image kernel: grid = (num_batch_blocks,), BB images per step.
# ----------------------------------------------------------------------------
def _lspa_block_kernel(pa_ref, pb_ref, su_ref, sd_ref, sl_ref, sr_ref,
                       org_ref, enh_ref, e_ref):
    f32 = jnp.float32
    BB, C, H, W = org_ref.shape
    inv_c = 1.0 / C
    inv_pool = 1.0 / (POOL * POOL)

    # fori-style loop over the images packed in this block: bounds live ranges
    # to one image's working set (no giant static unroll for large BB).
    @pl.loop(0, BB)
    def _(b):
        # Channel-mean difference accumulated channel-by-channel straight from
        # the refs: only ~2 (H, W) slices live at a time.
        d = org_ref[b, 0].astype(f32) - enh_ref[b, 0].astype(f32)
        for c in range(1, C):
            d = d + (org_ref[b, c].astype(f32) - enh_ref[b, c].astype(f32))
        d = d * inv_c

        # AvgPool2d(4): two MXU matmuls with 0/1 matrices, f32 accumulate.
        dp = jnp.dot(jnp.dot(pa_ref[...], d, preferred_element_type=f32),
                     pb_ref[...], preferred_element_type=f32) * inv_pool

        # D_org_* - D_enh_* == (x - shift(x)) applied to dp (by linearity).
        dl = dp - jnp.dot(dp, sl_ref[...], preferred_element_type=f32)   # left
        dr = dp - jnp.dot(dp, sr_ref[...], preferred_element_type=f32)   # right
        du = dp - jnp.dot(su_ref[...], dp, preferred_element_type=f32)   # up
        dd = dp - jnp.dot(sd_ref[...], dp, preferred_element_type=f32)   # down

        E = dl * dl + dr * dr + du * du + dd * dd
        e_ref[b, 0] = E.astype(e_ref.dtype)


# ----------------------------------------------------------------------------
# Channel-tiled fallback kernel: grid = (B, C), (H, W) accumulator scratch.
# Used when a whole (C, H, W) image pair does not fit the VMEM budget.
# ----------------------------------------------------------------------------
def _make_channel_tiled_kernel(C):
    inv_c = 1.0 / C
    inv_pool = 1.0 / (POOL * POOL)

    def kernel(pa_ref, pb_ref, su_ref, sd_ref, sl_ref, sr_ref,
               org_ref, enh_ref, e_ref, d_acc):
        f32 = jnp.float32
        c = pl.program_id(1)

        @pl.when(c == 0)
        def _():
            d_acc[...] = jnp.zeros_like(d_acc)

        d_acc[...] += org_ref[0, 0].astype(f32) - enh_ref[0, 0].astype(f32)

        @pl.when(c == C - 1)
        def _():
            d = d_acc[...] * inv_c
            dp = jnp.dot(jnp.dot(pa_ref[...], d, preferred_element_type=f32),
                         pb_ref[...], preferred_element_type=f32) * inv_pool
            dl = dp - jnp.dot(dp, sl_ref[...], preferred_element_type=f32)
            dr = dp - jnp.dot(dp, sr_ref[...], preferred_element_type=f32)
            du = dp - jnp.dot(su_ref[...], dp, preferred_element_type=f32)
            dd = dp - jnp.dot(sd_ref[...], dp, preferred_element_type=f32)
            E = dl * dl + dr * dr + du * du + dd * dd
            e_ref[0, 0] = E.astype(e_ref.dtype)

    return kernel


# ----------------------------------------------------------------------------
# Wrapper
# ----------------------------------------------------------------------------
def _tile_bytes(rows, cols):
    """Padded VMEM footprint of a (rows, cols) f32 tile: (8, 128) tiling."""
    return (pl.cdiv(rows, 8) * 8) * (pl.cdiv(cols, 128) * 128) * 4


def _vmem_capacity_bytes():
    try:
        info = pltpu.get_tpu_info()
        cap = int(getattr(info, "vmem_capacity_bytes", 0))
        if cap > 0:
            return cap
    except Exception:
        pass
    return 64 << 20  # conservative default (v7x per-TensorCore VMEM)


def lspa_loss(org, enh, *, batch_block=None, force_channel_tiled=False):
    """Pallas implementation of LSpaLoss.forward. Returns E of shape (B,1,H/4,W/4)."""
    B, C, H, W = org.shape
    assert enh.shape == org.shape
    assert H % POOL == 0 and W % POOL == 0, "AvgPool2d(4) needs H, W divisible by 4"
    Hp, Wp = H // POOL, W // POOL

    consts = _operators(H, W)   # pA, pB, su, sd, sl, sr

    vmem_cap = _vmem_capacity_bytes()

    # ---- tile-aware ((8,128)-padded) VMEM accounting -----------------------
    img_hw = _tile_bytes(H, W)             # one (H, W) f32 channel slice
    pooled_hw = _tile_bytes(Hp, Wp)
    const_bytes = (_tile_bytes(Hp, H) + _tile_bytes(W, Wp)
                   + 2 * _tile_bytes(Hp, Hp) + 2 * _tile_bytes(Wp, Wp))
    per_image_in = 2 * C * img_hw          # org + enh, all channels, one image
    # live in-kernel temporaries per image: d + 2 channel slices, pA@d
    # intermediate, pooled map + 4 diffs + E (+ slack).
    temp_bytes = 3 * img_hw + _tile_bytes(Hp, W) + 8 * pooled_hw

    # Whole-image footprint at BB=1 (inputs/outputs/constants double-buffered).
    whole_img_bytes = 2 * (per_image_in + pooled_hw + const_bytes) + temp_bytes
    use_channel_tiled = force_channel_tiled or whole_img_bytes > int(0.70 * vmem_cap)

    if use_channel_tiled:
        # Channel-tiled fallback: per-step block is one (H, W) channel slice of
        # each input; the pool/shift/E finalize runs on the last channel.
        in_block = 2 * img_hw
        vmem_needed = (2 * (in_block + pooled_hw + const_bytes)
                       + img_hw                                  # d_acc scratch
                       + _tile_bytes(Hp, W) + 8 * pooled_hw)     # finalize temps
        vmem_limit = min(vmem_cap, max(32 << 20, int(1.25 * vmem_needed) + (2 << 20)))
        # TODO(synk): spatially-tiled variant for images whose single (H, W)
        # channel slice still does not fit VMEM.
        const_spec = lambda shape: pl.BlockSpec(shape, lambda b, c: (0, 0))
        return pl.pallas_call(
            _make_channel_tiled_kernel(C),
            out_shape=jax.ShapeDtypeStruct((B, 1, Hp, Wp), jnp.float32),
            grid_spec=pltpu.PrefetchScalarGridSpec(
                num_scalar_prefetch=0,
                grid=(B, C),
                in_specs=[const_spec(x.shape) for x in consts] + [
                    pl.BlockSpec((1, 1, H, W), lambda b, c: (b, c, 0, 0)),
                    pl.BlockSpec((1, 1, H, W), lambda b, c: (b, c, 0, 0)),
                ],
                out_specs=pl.BlockSpec((1, 1, Hp, Wp), lambda b, c: (b, 0, 0, 0)),
                scratch_shapes=[pltpu.VMEM((H, W), jnp.float32)],
            ),
            compiler_params=pltpu.CompilerParams(
                dimension_semantics=("parallel", "arbitrary"),
                vmem_limit_bytes=vmem_limit,
            ),
        )(*consts, org, enh)

    # ---- whole-image path ---------------------------------------------------
    if batch_block is None:
        # Per-step input budget: smaller steps on 64 MiB (v7x) parts so both
        # TensorCores stay fed; larger steps on 128 MiB (v5e/v6e) parts.
        step_budget = (6 << 20) if vmem_cap <= (64 << 20) else (16 << 20)
        cap = max(1, step_budget // per_image_in)
        # Keep >= ~8 grid steps (>= 3-4 per v7x TensorCore) when B allows, so
        # the double-buffered pipeline overlaps input DMA with compute.
        cap = min(cap, max(1, B // 8))
        batch_block = int(min(cap, B))
    BB = max(1, int(batch_block))

    # Pad the batch (instead of degrading BB to a divisor of B); padded images
    # are computed (E == 0) and sliced away below.
    steps = pl.cdiv(B, BB)
    B_pad = steps * BB
    if B_pad != B:
        pad = ((0, B_pad - B), (0, 0), (0, 0), (0, 0))
        org_p, enh_p = jnp.pad(org, pad), jnp.pad(enh, pad)
    else:
        org_p, enh_p = org, enh

    in_block = BB * per_image_in
    out_block = BB * pooled_hw
    vmem_needed = 2 * (in_block + out_block + const_bytes) + temp_bytes
    vmem_limit = min(vmem_cap, max(32 << 20, int(1.25 * vmem_needed) + (2 << 20)))

    const_spec = lambda shape: pl.BlockSpec(shape, lambda b: (0, 0))
    out = pl.pallas_call(
        _lspa_block_kernel,
        out_shape=jax.ShapeDtypeStruct((B_pad, 1, Hp, Wp), jnp.float32),
        grid_spec=pltpu.PrefetchScalarGridSpec(
            num_scalar_prefetch=0,
            grid=(steps,),
            in_specs=[const_spec(x.shape) for x in consts] + [
                pl.BlockSpec((BB, C, H, W), lambda b: (b, 0, 0, 0)),
                pl.BlockSpec((BB, C, H, W), lambda b: (b, 0, 0, 0)),
            ],
            out_specs=pl.BlockSpec((BB, 1, Hp, Wp), lambda b: (b, 0, 0, 0)),
        ),
        compiler_params=pltpu.CompilerParams(
            # Batch steps are independent -> "parallel" lets v7x split the grid
            # across its two TensorCores.
            dimension_semantics=("parallel",),
            vmem_limit_bytes=vmem_limit,
        ),
    )(*consts, org_p, enh_p)
    return out if B_pad == B else out[:B]


# ----------------------------------------------------------------------------
# Pure-JAX reference mirroring the PyTorch forward (returned value only).
# ----------------------------------------------------------------------------
def _lspa_ref(org, enh):
    om = jnp.mean(org, axis=1, keepdims=True)
    em = jnp.mean(enh, axis=1, keepdims=True)

    def pool(x):
        B, _, H, W = x.shape
        return x.reshape(B, 1, H // POOL, POOL, W // POOL, POOL).mean(axis=(3, 5))

    op, ep = pool(om), pool(em)

    def diffs(x):
        left = jnp.pad(x, ((0, 0), (0, 0), (0, 0), (1, 0)))[..., :, :-1]
        right = jnp.pad(x, ((0, 0), (0, 0), (0, 0), (0, 1)))[..., :, 1:]
        up = jnp.pad(x, ((0, 0), (0, 0), (1, 0), (0, 0)))[..., :-1, :]
        down = jnp.pad(x, ((0, 0), (0, 0), (0, 1), (0, 0)))[..., 1:, :]
        return x - left, x - right, x - up, x - down

    ol, orr, ou, od = diffs(op)
    el, er, eu, ed = diffs(ep)
    return (ol - el) ** 2 + (orr - er) ** 2 + (ou - eu) ** 2 + (od - ed) ** 2


if __name__ == "__main__":
    key = jax.random.PRNGKey(0)
    k1, k2, k3, k4, k5, k6 = jax.random.split(key, 6)

    def check(out, ref):
        assert out.shape == ref.shape
        assert jnp.allclose(out, ref, rtol=1e-5, atol=1e-5)

    # Config 1: canonical small test, default BB selection (BB=1, grid=(2,)).
    B, C, H, W = 2, 4, 16, 16
    org = jax.random.uniform(k1, (B, C, H, W), dtype=jnp.float32)
    enh = jax.random.uniform(k2, (B, C, H, W), dtype=jnp.float32)
    out = lspa_loss(org, enh)
    jax.block_until_ready(out)
    check(out, _lspa_ref(org, enh))

    # Config 2: batch packing (BB=2 -> pl.loop over 2 images per grid step).
    B2, C2, H2, W2 = 4, 3, 32, 32
    org2 = jax.random.uniform(k3, (B2, C2, H2, W2), dtype=jnp.float32)
    enh2 = jax.random.uniform(k4, (B2, C2, H2, W2), dtype=jnp.float32)
    out2 = lspa_loss(org2, enh2, batch_block=2)
    jax.block_until_ready(out2)
    check(out2, _lspa_ref(org2, enh2))

    # Config 3: awkward batch (B=3, BB=2) -> padded-batch path + output slice.
    B3 = 3
    org3 = jax.random.uniform(k5, (B3, C2, H2, W2), dtype=jnp.float32)
    enh3 = jax.random.uniform(k6, (B3, C2, H2, W2), dtype=jnp.float32)
    out3 = lspa_loss(org3, enh3, batch_block=2)
    jax.block_until_ready(out3)
    check(out3, _lspa_ref(org3, enh3))

    # Config 4: channel-tiled fallback path (used for very large images).
    out4 = lspa_loss(org, enh, force_channel_tiled=True)
    jax.block_until_ready(out4)
    check(out4, _lspa_ref(org, enh))

    print("KERNEL_OK")
</pallas_src>

<mosaic_0001>
module attributes {stable_mosaic.version = 11 : i64} {
  func.func @_lspa_block_kernel(%arg0: i32, %arg1: memref<4x16xf32, #tpu.memory_space<vmem>>, %arg2: memref<16x4xf32, #tpu.memory_space<vmem>>, %arg3: memref<4x4xf32, #tpu.memory_space<vmem>>, %arg4: memref<4x4xf32, #tpu.memory_space<vmem>>, %arg5: memref<4x4xf32, #tpu.memory_space<vmem>>, %arg6: memref<4x4xf32, #tpu.memory_space<vmem>>, %arg7: memref<1x4x16x16xf32, #tpu.memory_space<vmem>>, %arg8: memref<1x4x16x16xf32, #tpu.memory_space<vmem>>, %arg9: memref<1x1x4x4xf32, #tpu.memory_space<vmem>>) attributes {dimension_semantics = [#tpu.dimension_semantics<parallel>], iteration_bounds = array<i64: 2>, scalar_prefetch = 0 : i64, scratch_operands = 0 : i64, tpu.core_type = #tpu.core_type<tc>, window_params = [{pipeline_mode = #tpu.pipeline_mode<synchronous>, transform_indices = @transform_0, window_bounds = array<i64: 4, 16>}, {pipeline_mode = #tpu.pipeline_mode<synchronous>, transform_indices = @transform_1, window_bounds = array<i64: 16, 4>}, {pipeline_mode = #tpu.pipeline_mode<synchronous>, transform_indices = @transform_2, window_bounds = array<i64: 4, 4>}, {pipeline_mode = #tpu.pipeline_mode<synchronous>, transform_indices = @transform_3, window_bounds = array<i64: 4, 4>}, {pipeline_mode = #tpu.pipeline_mode<synchronous>, transform_indices = @transform_4, window_bounds = array<i64: 4, 4>}, {pipeline_mode = #tpu.pipeline_mode<synchronous>, transform_indices = @transform_5, window_bounds = array<i64: 4, 4>}, {transform_indices = @transform_6, window_bounds = array<i64: 1, 4, 16, 16>}, {transform_indices = @transform_7, window_bounds = array<i64: 1, 4, 16, 16>}, {transform_indices = @transform_8, window_bounds = array<i64: 1, 1, 4, 4>}]} {
    %c0_i32 = arith.constant 0 : i32
    %c1_i32 = arith.constant 1 : i32
    %0 = arith.muli %c0_i32, %c1_i32 : i32
    %c0_i32_0 = arith.constant 0 : i32
    %1 = arith.addi %c0_i32_0, %0 : i32
    %2 = arith.index_cast %1 : i32 to index
    %c0 = arith.constant 0 : index
    %c0_1 = arith.constant 0 : index
    %c0_2 = arith.constant 0 : index
    %3 = vector.load %arg7[%2, %c0, %c0_1, %c0_2] : memref<1x4x16x16xf32, #tpu.memory_space<vmem>>, vector<1x1x16x16xf32>
    %4 = vector.shape_cast %3 : vector<1x1x16x16xf32> to vector<16x16xf32>
    %5 = arith.index_cast %1 : i32 to index
    %c0_3 = arith.constant 0 : index
    %c0_4 = arith.constant 0 : index
    %c0_5 = arith.constant 0 : index
    %6 = vector.load %arg8[%5, %c0_3, %c0_4, %c0_5] : memref<1x4x16x16xf32, #tpu.memory_space<vmem>>, vector<1x1x16x16xf32>
    %7 = vector.shape_cast %6 : vector<1x1x16x16xf32> to vector<16x16xf32>
    %8 = arith.subf %4, %7 : vector<16x16xf32>
    %9 = arith.index_cast %1 : i32 to index
    %c1 = arith.constant 1 : index
    %c0_6 = arith.constant 0 : index
    %c0_7 = arith.constant 0 : index
    %10 = vector.load %arg7[%9, %c1, %c0_6, %c0_7] : memref<1x4x16x16xf32, #tpu.memory_space<vmem>>, vector<1x1x16x16xf32>
    %11 = vector.shape_cast %10 : vector<1x1x16x16xf32> to vector<16x16xf32>
    %12 = arith.index_cast %1 : i32 to index
    %c1_8 = arith.constant 1 : index
    %c0_9 = arith.constant 0 : index
    %c0_10 = arith.constant 0 : index
    %13 = vector.load %arg8[%12, %c1_8, %c0_9, %c0_10] : memref<1x4x16x16xf32, #tpu.memory_space<vmem>>, vector<1x1x16x16xf32>
    %14 = vector.shape_cast %13 : vector<1x1x16x16xf32> to vector<16x16xf32>
    %15 = arith.subf %11, %14 : vector<16x16xf32>
    %16 = arith.addf %8, %15 : vector<16x16xf32>
    %17 = arith.index_cast %1 : i32 to index
    %c2 = arith.constant 2 : index
    %c0_11 = arith.constant 0 : index
    %c0_12 = arith.constant 0 : index
    %18 = vector.load %arg7[%17, %c2, %c0_11, %c0_12] : memref<1x4x16x16xf32, #tpu.memory_space<vmem>>, vector<1x1x16x16xf32>
    %19 = vector.shape_cast %18 : vector<1x1x16x16xf32> to vector<16x16xf32>
    %20 = arith.index_cast %1 : i32 to index
    %c2_13 = arith.constant 2 : index
    %c0_14 = arith.constant 0 : index
    %c0_15 = arith.constant 0 : index
    %21 = vector.load %arg8[%20, %c2_13, %c0_14, %c0_15] : memref<1x4x16x16xf32, #tpu.memory_space<vmem>>, vector<1x1x16x16xf32>
    %22 = vector.shape_cast %21 : vector<1x1x16x16xf32> to vector<16x16xf32>
    %23 = arith.subf %19, %22 : vector<16x16xf32>
    %24 = arith.addf %16, %23 : vector<16x16xf32>
    %25 = arith.index_cast %1 : i32 to index
    %c3 = arith.constant 3 : index
    %c0_16 = arith.constant 0 : index
    %c0_17 = arith.constant 0 : index
    %26 = vector.load %arg7[%25, %c3, %c0_16, %c0_17] : memref<1x4x16x16xf32, #tpu.memory_space<vmem>>, vector<1x1x16x16xf32>
    %27 = vector.shape_cast %26 : vector<1x1x16x16xf32> to vector<16x16xf32>
    %28 = arith.index_cast %1 : i32 to index
    %c3_18 = arith.constant 3 : index
    %c0_19 = arith.constant 0 : index
    %c0_20 = arith.constant 0 : index
    %29 = vector.load %arg8[%28, %c3_18, %c0_19, %c0_20] : memref<1x4x16x16xf32, #tpu.memory_space<vmem>>, vector<1x1x16x16xf32>
    %30 = vector.shape_cast %29 : vector<1x1x16x16xf32> to vector<16x16xf32>
    %31 = arith.subf %27, %30 : vector<16x16xf32>
    %32 = arith.addf %24, %31 : vector<16x16xf32>
    %cst = arith.constant 2.500000e-01 : f32
    %33 = vector.broadcast %cst : f32 to vector<16x16xf32>
    %34 = arith.mulf %32, %33 : vector<16x16xf32>
    %c0_21 = arith.constant 0 : index
    %c0_22 = arith.constant 0 : index
    %35 = vector.load %arg1[%c0_21, %c0_22] : memref<4x16xf32, #tpu.memory_space<vmem>>, vector<4x16xf32>
    %cst_23 = arith.constant dense<0.000000e+00> : vector<4x16xf32>
    %36 = tpu.matmul %35, %34, %cst_23 {dimension_numbers = #tpu.dot_dimension_numbers<[1], [0], [0], [1], [0, 0, 1, 1], [], []>} : vector<4x16xf32>, vector<16x16xf32>, vector<4x16xf32> -> vector<4x16xf32>
    %c0_24 = arith.constant 0 : index
    %c0_25 = arith.constant 0 : index
    %37 = vector.load %arg2[%c0_24, %c0_25] : memref<16x4xf32, #tpu.memory_space<vmem>>, vector<16x4xf32>
    %cst_26 = arith.constant dense<0.000000e+00> : vector<4x4xf32>
    %38 = tpu.matmul %36, %37, %cst_26 {dimension_numbers = #tpu.dot_dimension_numbers<[1], [0], [0], [1], [0, 0, 1, 1], [], []>} : vector<4x16xf32>, vector<16x4xf32>, vector<4x4xf32> -> vector<4x4xf32>
    %cst_27 = arith.constant 6.250000e-02 : f32
    %39 = vector.broadcast %cst_27 : f32 to vector<4x4xf32>
    %40 = arith.mulf %38, %39 : vector<4x4xf32>
    %c0_28 = arith.constant 0 : index
    %c0_29 = arith.constant 0 : index
    %41 = vector.load %arg5[%c0_28, %c0_29] : memref<4x4xf32, #tpu.memory_space<vmem>>, vector<4x4xf32>
    %cst_30 = arith.constant dense<0.000000e+00> : vector<4x4xf32>
    %42 = tpu.matmul %40, %41, %cst_30 {dimension_numbers = #tpu.dot_dimension_numbers<[1], [0], [0], [1], [0, 0, 1, 1], [], []>} : vector<4x4xf32>, vector<4x4xf32>, vector<4x4xf32> -> vector<4x4xf32>
    %43 = arith.subf %40, %42 : vector<4x4xf32>
    %c0_31 = arith.constant 0 : index
    %c0_32 = arith.constant 0 : index
    %44 = vector.load %arg6[%c0_31, %c0_32] : memref<4x4xf32, #tpu.memory_space<vmem>>, vector<4x4xf32>
    %cst_33 = arith.constant dense<0.000000e+00> : vector<4x4xf32>
    %45 = tpu.matmul %40, %44, %cst_33 {dimension_numbers = #tpu.dot_dimension_numbers<[1], [0], [0], [1], [0, 0, 1, 1], [], []>} : vector<4x4xf32>, vector<4x4xf32>, vector<4x4xf32> -> vector<4x4xf32>
    %46 = arith.subf %40, %45 : vector<4x4xf32>
    %c0_34 = arith.constant 0 : index
    %c0_35 = arith.constant 0 : index
    %47 = vector.load %arg3[%c0_34, %c0_35] : memref<4x4xf32, #tpu.memory_space<vmem>>, vector<4x4xf32>
    %cst_36 = arith.constant dense<0.000000e+00> : vector<4x4xf32>
    %48 = tpu.matmul %47, %40, %cst_36 {dimension_numbers = #tpu.dot_dimension_numbers<[1], [0], [0], [1], [0, 0, 1, 1], [], []>} : vector<4x4xf32>, vector<4x4xf32>, vector<4x4xf32> -> vector<4x4xf32>
    %49 = arith.subf %40, %48 : vector<4x4xf32>
    %c0_37 = arith.constant 0 : index
    %c0_38 = arith.constant 0 : index
    %50 = vector.load %arg4[%c0_37, %c0_38] : memref<4x4xf32, #tpu.memory_space<vmem>>, vector<4x4xf32>
    %cst_39 = arith.constant dense<0.000000e+00> : vector<4x4xf32>
    %51 = tpu.matmul %50, %40, %cst_39 {dimension_numbers = #tpu.dot_dimension_numbers<[1], [0], [0], [1], [0, 0, 1, 1], [], []>} : vector<4x4xf32>, vector<4x4xf32>, vector<4x4xf32> -> vector<4x4xf32>
    %52 = arith.subf %40, %51 : vector<4x4xf32>
    %53 = arith.mulf %43, %43 : vector<4x4xf32>
    %54 = arith.mulf %46, %46 : vector<4x4xf32>
    %55 = arith.addf %53, %54 : vector<4x4xf32>
    %56 = arith.mulf %49, %49 : vector<4x4xf32>
    %57 = arith.addf %55, %56 : vector<4x4xf32>
    %58 = arith.mulf %52, %52 : vector<4x4xf32>
    %59 = arith.addf %57, %58 : vector<4x4xf32>
    %60 = arith.index_cast %1 : i32 to index
    %c0_40 = arith.constant 0 : index
    %c0_41 = arith.constant 0 : index
    %c0_42 = arith.constant 0 : index
    %61 = vector.load %arg9[%60, %c0_40, %c0_41, %c0_42] : memref<1x1x4x4xf32, #tpu.memory_space<vmem>>, vector<1x1x4x4xf32>
    %62 = vector.shape_cast %61 : vector<1x1x4x4xf32> to vector<4x4xf32>
    %63 = vector.shape_cast %59 : vector<4x4xf32> to vector<1x1x4x4xf32>
    tpu.vector_store %arg9[%60, %c0_40, %c0_41, %c0_42], %63 {strides = array<i32>} : memref<1x1x4x4xf32, #tpu.memory_space<vmem>>, vector<1x1x4x4xf32>,
    %c1_i32_43 = arith.constant 1 : i32
    return
  }
  func.func @transform_0(%arg0: i32) -> (i32, i32) {
    %c0_i32 = arith.constant 0 : i32
    %c0_i32_0 = arith.constant 0 : i32
    %c0_i32_1 = arith.constant 0 : i32
    return %c0_i32, %c0_i32_0 : i32, i32
  }
  func.func @transform_1(%arg0: i32) -> (i32, i32) {
    %c0_i32 = arith.constant 0 : i32
    %c0_i32_0 = arith.constant 0 : i32
    %c0_i32_1 = arith.constant 0 : i32
    return %c0_i32, %c0_i32_0 : i32, i32
  }
  func.func @transform_2(%arg0: i32) -> (i32, i32) {
    %c0_i32 = arith.constant 0 : i32
    %c0_i32_0 = arith.constant 0 : i32
    %c0_i32_1 = arith.constant 0 : i32
    return %c0_i32, %c0_i32_0 : i32, i32
  }
  func.func @transform_3(%arg0: i32) -> (i32, i32) {
    %c0_i32 = arith.constant 0 : i32
    %c0_i32_0 = arith.constant 0 : i32
    %c0_i32_1 = arith.constant 0 : i32
    return %c0_i32, %c0_i32_0 : i32, i32
  }
  func.func @transform_4(%arg0: i32) -> (i32, i32) {
    %c0_i32 = arith.constant 0 : i32
    %c0_i32_0 = arith.constant 0 : i32
    %c0_i32_1 = arith.constant 0 : i32
    return %c0_i32, %c0_i32_0 : i32, i32
  }
  func.func @transform_5(%arg0: i32) -> (i32, i32) {
    %c0_i32 = arith.constant 0 : i32
    %c0_i32_0 = arith.constant 0 : i32
    %c0_i32_1 = arith.constant 0 : i32
    return %c0_i32, %c0_i32_0 : i32, i32
  }
  func.func @transform_6(%arg0: i32) -> (i32, i32, i32, i32) {
    %c0_i32 = arith.constant 0 : i32
    %c0_i32_0 = arith.constant 0 : i32
    %c0_i32_1 = arith.constant 0 : i32
    %c0_i32_2 = arith.constant 0 : i32
    return %arg0, %c0_i32, %c0_i32_0, %c0_i32_1 : i32, i32, i32, i32
  }
  func.func @transform_7(%arg0: i32) -> (i32, i32, i32, i32) {
    %c0_i32 = arith.constant 0 : i32
    %c0_i32_0 = arith.constant 0 : i32
    %c0_i32_1 = arith.constant 0 : i32
    %c0_i32_2 = arith.constant 0 : i32
    return %arg0, %c0_i32, %c0_i32_0, %c0_i32_1 : i32, i32, i32, i32
  }
  func.func @transform_8(%arg0: i32) -> (i32, i32, i32, i32) {
    %c0_i32 = arith.constant 0 : i32
    %c0_i32_0 = arith.constant 0 : i32
    %c0_i32_1 = arith.constant 0 : i32
    %c0_i32_2 = arith.constant 0 : i32
    return %arg0, %c0_i32, %c0_i32_0, %c0_i32_1 : i32, i32, i32, i32
  }
}

</mosaic_0001>

<llo_original>
// kernel: tpu_custom_call.1
$region0: #{tpu_custom_call.1}
  #allocation0 [shape = 'u32[]', space=smem, size = 0x4, offset = 0x4, fixed_abs, tag = 'smem constant byte address 0x4 - core index']
  #allocation1 [shape = 'u32[144,128]{1,0:T(1,128)}', space=vmem, size = 0x12000, scoped, tag = 'internal scratch']
  %s0 = inlined_call_operand.vmem [shape: f32[4,16], index: 0, kind: input, shape index: {}]
  %s1 = inlined_call_operand.vmem [shape: f32[16,4], index: 1, kind: input, shape index: {}]
  %s2 = inlined_call_operand.vmem [shape: f32[4,4], index: 2, kind: input, shape index: {}]
  %s3 = inlined_call_operand.vmem [shape: f32[4,4], index: 3, kind: input, shape index: {}]
  %s4 = inlined_call_operand.vmem [shape: f32[4,4], index: 4, kind: input, shape index: {}]
  %s5 = inlined_call_operand.vmem [shape: f32[4,4], index: 5, kind: input, shape index: {}]
  %s6 = inlined_call_operand.hbm [shape: f32[2,4,16,16], index: 6, kind: input, shape index: {}]
  %s7 = inlined_call_operand.hbm [shape: f32[2,4,16,16], index: 7, kind: input, shape index: {}]
  %s8 = inlined_call_operand.hbm [shape: f32[2,1,4,4], index: 8, kind: output, shape index: {}]
  %s9 = sld [smem:[#allocation0]]
  $region73: #{tpu_custom_call.1} parent=0
    _
  %s11 = ssub.s32 1, %s9
  %s12 = scalar_select 0, %s11, %s9
  $region1: #{tpu_custom_call.1} parent=0
    #allocation2 [shape = 'u8[65536]{0}', space=vmem, size = 0x10000, scoped, tag = 'input window, operand 6']
    #allocation3 [shape = 's32[2]{0}', space=sflag, size = 0x8, scoped, tag = 'scoped memory for tpu_custom_call.1']
    #allocation4 [shape = 's32[2]{0}', space=sflag, size = 0x8, scoped, tag = 'scoped memory for tpu_custom_call.1']
    #allocation5 [shape = 'u8[65536]{0}', space=vmem, size = 0x10000, scoped, tag = 'input window, operand 7']
    #allocation6 [shape = 's32[2]{0}', space=sflag, size = 0x8, scoped, tag = 'scoped memory for tpu_custom_call.1']
    #allocation7 [shape = 'u8[4096]{0}', space=vmem, size = 0x1000, scoped, tag = 'output window, operand 0']
    %13 = vsyncpa [#allocation3], 0
    %s14 = scalar_lea.sflag [#allocation3], 1
    %15 = vsyncpa %s14, 0
    %16 = vsyncpa [#allocation6], 0
    %s17 = scalar_lea.sflag [#allocation6], 1
    %18 = vsyncpa %s17, 0
    %19 = vsyncpa [#allocation4], 0
    %s20 = scalar_lea.sflag [#allocation4], 1
    %21 = vsyncpa %s20, 0
    loop: start=0, step=1, limit=4
    $region2: #{tpu_custom_call.1} parent=1 // loop_pre_header
      _
    $region3: #{tpu_custom_call.1} parent=1 // loop_header
      %s23 = sphi 0, %s27
      %p24 = scmp.ge.s32.totalorder %s23, 4
      %s31 = sphi 0, %s31
      %s33 = sphi 0, %s31
      %s34 = sphi 0, %s33
      %s48 = sphi 0, %s34
      %s52 = sphi 0, %s52
      %s54 = sphi 0, %s52
      %s55 = sphi 0, %s54
      %s69 = sphi 0, %s55
      %s73 = sphi 0, %s73
      %s75 = sphi 0, %s73
      %s76 = sphi 0, %s75
      %s90 = sphi 0, %s76
      %s94 = sphi 0, %s94
      %s96 = sphi 0, %s94
      %s97 = sphi 0, %s96
      %s111 = sphi 0, %s97
      %s115 = sphi 0, %s115
      %s117 = sphi 0, %s115
      %s118 = sphi 0, %s117
      %s132 = sphi 0, %s118
      %s136 = sphi 0, %s136
      %s138 = sphi 0, %s136
      %s139 = sphi 0, %s138
      %s153 = sphi 0, %s139
      %s159 = sphi 0, %s161
      %s162 = sphi 0, %s159
      %s163 = sphi 0, %s162
      %s179 = sphi 0, %s163
      %s185 = sphi 0, %s187
      %s188 = sphi 0, %s185
      %s189 = sphi 0, %s188
      %s205 = sphi 0, %s189
      %s211 = sphi 0, %s213
      %s214 = sphi 0, %s211
      %s215 = sphi 0, %s214
      %s231 = sphi 0, %s215
    $region4: #{tpu_custom_call.1} parent=1 // loop_header_branch
      %26 = sbr.rel (%p24) target = $region8
    $region5: #{tpu_custom_call.1} parent=1 // loop_body
      %s28 = ssub.s32 %s23, 1
      %s29 = ssub.s32 %s23, 2
      %s30 = sadd.s32 %s23, 1
      %s32 = sadd.s32 %s31, 1
      %p35 = scmp.eq.s32.totalorder %s23, 1
      %p36 = scmp.ne.s32.totalorder %s31, %s33
      %p37 = scmp.eq.s32.totalorder %s23, 0
      %p38 = por %p36, %p37
      %p39 = scmp.ne.s32.totalorder %s31, %s33
      %p40 = scmp.eq.s32.totalorder %s28, 1
      %p41 = por %p39, %p40
      %p42 = scmp.ne.s32.totalorder %s33, %s34
      %p43 = scmp.eq.s32.totalorder %s28, 0
      %p44 = por %p42, %p43
      %p45 = scmp.ne.s32.totalorder %s33, %s34
      %p46 = scmp.eq.s32.totalorder %s29, 1
      %p47 = por %p45, %p46
      %p49 = scmp.ne.s32.totalorder %s34, %s48
      %p50 = scmp.eq.s32.totalorder %s29, 0
      %p51 = por %p49, %p50
      %s53 = sadd.s32 %s52, 1
      %p56 = scmp.eq.s32.totalorder %s23, 1
      %p57 = scmp.ne.s32.totalorder %s52, %s54
      %p58 = scmp.eq.s32.totalorder %s23, 0
      %p59 = por %p57, %p58
      %p60 = scmp.ne.s32.totalorder %s52, %s54
      %p61 = scmp.eq.s32.totalorder %s28, 1
      %p62 = por %p60, %p61
      %p63 = scmp.ne.s32.totalorder %s54, %s55
      %p64 = scmp.eq.s32.totalorder %s28, 0
      %p65 = por %p63, %p64
      %p66 = scmp.ne.s32.totalorder %s54, %s55
      %p67 = scmp.eq.s32.totalorder %s29, 1
      %p68 = por %p66, %p67
      %p70 = scmp.ne.s32.totalorder %s55, %s69
      %p71 = scmp.eq.s32.totalorder %s29, 0
      %p72 = por %p70, %p71
      %s74 = sadd.s32 %s73, 1
      %p77 = scmp.eq.s32.totalorder %s23, 1
      %p78 = scmp.ne.s32.totalorder %s73, %s75
      %p79 = scmp.eq.s32.totalorder %s23, 0
      %p80 = por %p78, %p79
      %p81 = scmp.ne.s32.totalorder %s73, %s75
      %p82 = scmp.eq.s32.totalorder %s28, 1
      %p83 = por %p81, %p82
      %p84 = scmp.ne.s32.totalorder %s75, %s76
      %p85 = scmp.eq.s32.totalorder %s28, 0
      %p86 = por %p84, %p85
      %p87 = scmp.ne.s32.totalorder %s75, %s76
      %p88 = scmp.eq.s32.totalorder %s29, 1
      %p89 = por %p87, %p88
      %p91 = scmp.ne.s32.totalorder %s76, %s90
      %p92 = scmp.eq.s32.totalorder %s29, 0
      %p93 = por %p91, %p92
      %s95 = sadd.s32 %s94, 1
      %p98 = scmp.eq.s32.totalorder %s23, 1
      %p99 = scmp.ne.s32.totalorder %s94, %s96
      %p100 = scmp.eq.s32.totalorder %s23, 0
      %p101 = por %p99, %p100
      %p102 = scmp.ne.s32.totalorder %s94, %s96
      %p103 = scmp.eq.s32.totalorder %s28, 1
      %p104 = por %p102, %p103
      %p105 = scmp.ne.s32.totalorder %s96, %s97
      %p106 = scmp.eq.s32.totalorder %s28, 0
      %p107 = por %p105, %p106
      %p108 = scmp.ne.s32.totalorder %s96, %s97
      %p109 = scmp.eq.s32.totalorder %s29, 1
      %p110 = por %p108, %p109
      %p112 = scmp.ne.s32.totalorder %s97, %s111
      %p113 = scmp.eq.s32.totalorder %s29, 0
      %p114 = por %p112, %p113
      %s116 = sadd.s32 %s115, 1
      %p119 = scmp.eq.s32.totalorder %s23, 1
      %p120 = scmp.ne.s32.totalorder %s115, %s117
      %p121 = scmp.eq.s32.totalorder %s23, 0
      %p122 = por %p120, %p121
      %p123 = scmp.ne.s32.totalorder %s115, %s117
      %p124 = scmp.eq.s32.totalorder %s28, 1
      %p125 = por %p123, %p124
      %p126 = scmp.ne.s32.totalorder %s117, %s118
      %p127 = scmp.eq.s32.totalorder %s28, 0
      %p128 = por %p126, %p127
      %p129 = scmp.ne.s32.totalorder %s117, %s118
      %p130 = scmp.eq.s32.totalorder %s29, 1
      %p131 = por %p129, %p130
      %p133 = scmp.ne.s32.totalorder %s118, %s132
      %p134 = scmp.eq.s32.totalorder %s29, 0
      %p135 = por %p133, %p134
      %s137 = sadd.s32 %s136, 1
      %p140 = scmp.eq.s32.totalorder %s23, 1
      %p141 = scmp.ne.s32.totalorder %s136, %s138
      %p142 = scmp.eq.s32.totalorder %s23, 0
      %p143 = por %p141, %p142
      %p144 = scmp.ne.s32.totalorder %s136, %s138
      %p145 = scmp.eq.s32.totalorder %s28, 1
      %p146 = por %p144, %p145
      %p147 = scmp.ne.s32.totalorder %s138, %s139
      %p148 = scmp.eq.s32.totalorder %s28, 0
      %p149 = por %p147, %p148
      %p150 = scmp.ne.s32.totalorder %s138, %s139
      %p151 = scmp.eq.s32.totalorder %s29, 1
      %p152 = por %p150, %p151
      %p154 = scmp.ne.s32.totalorder %s139, %s153
      %p155 = scmp.eq.s32.totalorder %s29, 0
      %p156 = por %p154, %p155
      %s157 = ssub.s32 %s23, %s30
      %p158 = scmp.eq.s32.totalorder %s157, 0
      %s160 = sadd.s32 %s159, 1
      %s161 = scalar_select %p158, %s159, %s160
      %p164 = pneg %p158
      %p165 = scmp.eq.s32.totalorder %s23, 1
      %p166 = por %p164, %p165
      %p167 = scmp.ne.s32.totalorder %s159, %s162
      %p168 = scmp.eq.s32.totalorder %s23, 0
      %p169 = por %p167, %p168
      %p170 = scmp.ne.s32.totalorder %s159, %s162
      %p171 = scmp.eq.s32.totalorder %s28, 1
      %p172 = por %p170, %p171
      %p173 = scmp.ne.s32.totalorder %s162, %s163
      %p174 = scmp.eq.s32.totalorder %s28, 0
      %p175 = por %p173, %p174
      %p176 = scmp.ne.s32.totalorder %s162, %s163
      %p177 = scmp.eq.s32.totalorder %s29, 1
      %p178 = por %p176, %p177
      %p180 = scmp.ne.s32.totalorder %s163, %s179
      %p181 = scmp.eq.s32.totalorder %s29, 0
      %p182 = por %p180, %p181
      %s183 = ssub.s32 %s23, %s30
      %p184 = scmp.eq.s32.totalorder %s183, 0
      %s186 = sadd.s32 %s185, 1
      %s187 = scalar_select %p184, %s185, %s186
      %p190 = pneg %p184
      %p191 = scmp.eq.s32.totalorder %s23, 1
      %p192 = por %p190, %p191
      %p193 = scmp.ne.s32.totalorder %s185, %s188
      %p194 = scmp.eq.s32.totalorder %s23, 0
      %p195 = por %p193, %p194
      %p196 = scmp.ne.s32.totalorder %s185, %s188
      %p197 = scmp.eq.s32.totalorder %s28, 1
      %p198 = por %p196, %p197
      %p199 = scmp.ne.s32.totalorder %s188, %s189
      %p200 = scmp.eq.s32.totalorder %s28, 0
      %p201 = por %p199, %p200
      %p202 = scmp.ne.s32.totalorder %s188, %s189
      %p203 = scmp.eq.s32.totalorder %s29, 1
      %p204 = por %p202, %p203
      %p206 = scmp.ne.s32.totalorder %s189, %s205
      %p207 = scmp.eq.s32.totalorder %s29, 0
      %p208 = por %p206, %p207
      %s209 = ssub.s32 %s23, %s30
      %p210 = scmp.eq.s32.totalorder %s209, 0
      %s212 = sadd.s32 %s211, 1
      %s213 = scalar_select %p210, %s211, %s212
      %p216 = pneg %p210
      %p217 = scmp.eq.s32.totalorder %s23, 1
      %p218 = por %p216, %p217
      %p219 = scmp.ne.s32.totalorder %s211, %s214
      %p220 = scmp.eq.s32.totalorder %s23, 0
      %p221 = por %p219, %p220
      %p222 = scmp.ne.s32.totalorder %s211, %s214
      %p223 = scmp.eq.s32.totalorder %s28, 1
      %p224 = por %p222, %p223
      %p225 = scmp.ne.s32.totalorder %s214, %s215
      %p226 = scmp.eq.s32.totalorder %s28, 0
      %p227 = por %p225, %p226
      %p228 = scmp.ne.s32.totalorder %s214, %s215
      %p229 = scmp.eq.s32.totalorder %s29, 1
      %p230 = por %p228, %p229
      %p232 = scmp.ne.s32.totalorder %s215, %s231
      %p233 = scmp.eq.s32.totalorder %s29, 0
      %p234 = por %p232, %p233
      %p235 = scmp.le.s32.totalorder 1, %s23
      %p236 = scmp.lt.s32.totalorder %s23, 3
      %p237 = pnand %p235, %p236
      %p238 = pneg %p237
      // Predicated region
      $region9: #{tpu_custom_call.1} parent=5 // pred_check
        _
      $region10: #{tpu_custom_call.1} parent=5 // pred_check_branch
        %240 = sbr.rel (%p237) target = $region12
      $region11: #{tpu_custom_call.1} parent=5 // pred_region
        %s241 = ssub.s32 %s23, 1
        // Predicated region
        $region13: #{tpu_custom_call.1} parent=11 // pred_check
          %p242 = pneg %p44
        $region14: #{tpu_custom_call.1} parent=11 // pred_check_branch
          %244 = sbr.rel (%p242) target = $region16
        $region15: #{tpu_custom_call.1} parent=11 // pred_region
          _
        $region16: #{tpu_custom_call.1} parent=11 // pred_fallthru
          _
        // Predicated region
        $region17: #{tpu_custom_call.1} parent=11 // pred_check
          %p245 = pneg %p65
        $region18: #{tpu_custom_call.1} parent=11 // pred_check_branch
          %247 = sbr.rel (%p245) target = $region20
        $region19: #{tpu_custom_call.1} parent=11 // pred_region
          _
        $region20: #{tpu_custom_call.1} parent=11 // pred_fallthru
          _
        // Predicated region
        $region21: #{tpu_custom_call.1} parent=11 // pred_check
          %p248 = pneg %p86
        $region22: #{tpu_custom_call.1} parent=11 // pred_check_branch
          %250 = sbr.rel (%p248) target = $region24
        $region23: #{tpu_custom_call.1} parent=11 // pred_region
          _
        $region24: #{tpu_custom_call.1} parent=11 // pred_fallthru
          _
        // Predicated region
        $region25: #{tpu_custom_call.1} parent=11 // pred_check
          %p251 = pneg %p107
        $region26: #{tpu_custom_call.1} parent=11 // pred_check_branch
          %253 = sbr.rel (%p251) target = $region28
        $region27: #{tpu_custom_call.1} parent=11 // pred_region
          _
        $region28: #{tpu_custom_call.1} parent=11 // pred_fallthru
          _
        // Predicated region
        $region29: #{tpu_custom_call.1} parent=11 // pred_check
          %p254 = pneg %p128
        $region30: #{tpu_custom_call.1} parent=11 // pred_check_branch
          %256 = sbr.rel (%p254) target = $region32
        $region31: #{tpu_custom_call.1} parent=11 // pred_region
          _
        $region32: #{tpu_custom_call.1} parent=11 // pred_fallthru
          _
        // Predicated region
        $region33: #{tpu_custom_call.1} parent=11 // pred_check
          %p257 = pneg %p149
        $region34: #{tpu_custom_call.1} parent=11 // pred_check_branch
          %259 = sbr.rel (%p257) target = $region36
        $region35: #{tpu_custom_call.1} parent=11 // pred_region
          _
        $region36: #{tpu_custom_call.1} parent=11 // pred_fallthru
          _
      $region12: #{tpu_custom_call.1} parent=5 // pred_fallthru
        _
      %p260 = scmp.lt.s32.totalorder %s23, 2
      // Predicated region
      $region37: #{tpu_custom_call.1} parent=5 // pred_check
        %p261 = pneg %p260
      $region38: #{tpu_custom_call.1} parent=5 // pred_check_branch
        %263 = sbr.rel (%p261) target = $region40
      $region39: #{tpu_custom_call.1} parent=5 // pred_region
        // Predicated region
        $region41: #{tpu_custom_call.1} parent=39 // pred_check
          %p264 = pneg %p169
        $region42: #{tpu_custom_call.1} parent=39 // pred_check_branch
          %266 = sbr.rel (%p264) target = $region44
        $region43: #{tpu_custom_call.1} parent=39 // pred_region
          %s267 = sand.u32 %s159, 1
          %s268 = scalar_lea.sflag [#allocation3], %s267
          %s269 = sand.u32 %s159, 1
          %s270 = smul.addr %s269, 64
          %s271 = scalar_lea.vmem [#allocation2], %s270
          %s273 = ssub.s32 1024, 1024
          %274 = vsyncadd %s268, %s273
          %s275 = smul.addr %s23, 8
          %s276 = smul.addr %s275, 128
          %s277 = scalar_lea.hbm %s6, %s276
          %s278 = sshll.u32 %s271, 4
          %s279 = int_to_ptr.vmem [resolvable:$true] %s278
          %284 = dma.hbm_to_vmem [thread:$0]  %s277, 1024, %s279, %s268, 128, 128, 8
        $region44: #{tpu_custom_call.1} parent=39 // pred_fallthru
          _
        // Predicated region
        $region45: #{tpu_custom_call.1} parent=39 // pred_check
          %p285 = pneg %p195
        $region46: #{tpu_custom_call.1} parent=39 // pred_check_branch
          %287 = sbr.rel (%p285) target = $region48
        $region47: #{tpu_custom_call.1} parent=39 // pred_region
          %s288 = sand.u32 %s185, 1
          %s289 = scalar_lea.sflag [#allocation6], %s288
          %s290 = sand.u32 %s185, 1
          %s291 = smul.addr %s290, 64
          %s292 = scalar_lea.vmem [#allocation5], %s291
          %s294 = ssub.s32 1024, 1024
          %295 = vsyncadd %s289, %s294
          %s296 = smul.addr %s23, 8
          %s297 = smul.addr %s296, 128
          %s298 = scalar_lea.hbm %s7, %s297
          %s299 = sshll.u32 %s292, 4
          %s300 = int_to_ptr.vmem [resolvable:$true] %s299
          %305 = dma.hbm_to_vmem [thread:$0]  %s298, 1024, %s300, %s289, 128, 128, 8
        $region48: #{tpu_custom_call.1} parent=39 // pred_fallthru
          _
      $region40: #{tpu_custom_call.1} parent=5 // pred_fallthru
        _
      %p306 = scmp.le.s32.totalorder 1, %s23
      %p307 = scmp.lt.s32.totalorder %s23, 3
      %p308 = pnand %p306, %p307
      %p309 = pneg %p308
      // Predicated region
      $region49: #{tpu_custom_call.1} parent=5 // pred_check
        _
      $region50: #{tpu_custom_call.1} parent=5 // pred_check_branch
        %311 = sbr.rel (%p308) target = $region52
      $region51: #{tpu_custom_call.1} parent=5 // pred_region
        %s312 = ssub.s32 %s23, 1
        %s313 = sand.u32 %s162, 1
        %s314 = scalar_lea.sflag [#allocation3], %s313
        %s315 = sand.u32 %s162, 1
        %s316 = smul.addr %s315, 64
        %s317 = scalar_lea.vmem [#allocation2], %s316
        // Predicated region
        $region53: #{tpu_custom_call.1} parent=51 // pred_check
          %p318 = pneg %p175
        $region54: #{tpu_custom_call.1} parent=51 // pred_check_branch
          %320 = sbr.rel (%p318) target = $region56
        $region55: #{tpu_custom_call.1} parent=51 // pred_region
          %321 = dma.done %s314, 1024
        $region56: #{tpu_custom_call.1} parent=51 // pred_fallthru
          _
        %s322 = sand.u32 %s188, 1
        %s323 = scalar_lea.sflag [#allocation6], %s322
        %s324 = sand.u32 %s188, 1
        %s325 = smul.addr %s324, 64
        %s326 = scalar_lea.vmem [#allocation5], %s325
        // Predicated region
        $region57: #{tpu_custom_call.1} parent=51 // pred_check
          %p327 = pneg %p201
        $region58: #{tpu_custom_call.1} parent=51 // pred_check_branch
          %329 = sbr.rel (%p327) target = $region60
        $region59: #{tpu_custom_call.1} parent=51 // pred_region
          %330 = dma.done %s323, 1024
        $region60: #{tpu_custom_call.1} parent=51 // pred_fallthru
          _
        %p331 = pneg %p44
        %p332 = pneg %p41
        %p333 = pneg %p65
        %p334 = pneg %p62
        %p335 = pneg %p86
        %p336 = pneg %p83
        %p337 = pneg %p107
        %p338 = pneg %p104
        %p339 = pneg %p128
        %p340 = pneg %p125
        %p341 = pneg %p149
        %p342 = pneg %p146
        %s343 = sand.u32 %s162, 1
        %s344 = scalar_lea.sflag [#allocation3], %s343
        %s345 = sand.u32 %s162, 1
        %s346 = smul.addr %s345, 64
        %s347 = scalar_lea.vmem [#allocation2], %s346
        %p348 = pneg %p175
        %p349 = pneg %p172
        %s350 = sand.u32 %s188, 1
        %s351 = scalar_lea.sflag [#allocation6], %s350
        %s352 = sand.u32 %s188, 1
        %s353 = smul.addr %s352, 64
        %s354 = scalar_lea.vmem [#allocation5], %s353
        %p355 = pneg %p201
        %p356 = pneg %p198
        %p357 = pneg %p227
        %p358 = pneg %p224
        %s359 = sand.u32 %s214, 1
        %s360 = scalar_lea.sflag [#allocation4], %s359
        %s361 = sand.u32 %s214, 1
        %s362 = smul.addr %s361, 4
        %s363 = scalar_lea.vmem [#allocation7], %s362
        %v364 = vld [vmem:[%s317] sm:$0xff]
        %v365 = vld [vmem:[%s317 + $0x8] sm:$0xff]
        %v366 = vld [vmem:[%s326] sm:$0xff]
        %v367 = vld [vmem:[%s326 + $0x8] sm:$0xff]
        %v368 = vsub.f32 %v364, %v366
        %v369 = vsub.f32 %v365, %v367
        %s370 = scalar_lea.vmem %s317, 16 [#allocation2]
        %v371 = vld [vmem:[%s370] sm:$0xff]
        %v372 = vld [vmem:[%s370 + $0x8] sm:$0xff]
        %s373 = scalar_lea.vmem %s326, 16 [#allocation5]
        %v374 = vld [vmem:[%s373] sm:$0xff]
        %v375 = vld [vmem:[%s373 + $0x8] sm:$0xff]
        %v376 = vsub.f32 %v371, %v374
        %v377 = vsub.f32 %v372, %v375
        %v378 = vadd.f32 %v368, %v376
        %v379 = vadd.f32 %v369, %v377
        %s380 = scalar_lea.vmem %s317, 32 [#allocation2]
        %v381 = vld [vmem:[%s380] sm:$0xff]
        %v382 = vld [vmem:[%s380 + $0x8] sm:$0xff]
        %s383 = scalar_lea.vmem %s326, 32 [#allocation5]
        %v384 = vld [vmem:[%s383] sm:$0xff]
        %v385 = vld [vmem:[%s383 + $0x8] sm:$0xff]
        %v386 = vsub.f32 %v381, %v384
        %v387 = vsub.f32 %v382, %v385
        %v388 = vadd.f32 %v378, %v386
        %v389 = vadd.f32 %v379, %v387
        %s390 = scalar_lea.vmem %s317, 48 [#allocation2]
        %v391 = vld [vmem:[%s390] sm:$0xff]
        %v392 = vld [vmem:[%s390 + $0x8] sm:$0xff]
        %s393 = scalar_lea.vmem %s326, 48 [#allocation5]
        %v394 = vld [vmem:[%s393] sm:$0xff]
        %v395 = vld [vmem:[%s393 + $0x8] sm:$0xff]
        %v396 = vsub.f32 %v391, %v394
        %v397 = vsub.f32 %v392, %v395
        %v398 = vadd.f32 %v388, %v396
        %v399 = vadd.f32 %v389, %v397
        %v400 = vmul.f32 %v398, 0.25
        %v401 = vmul.f32 %v399, 0.25
        %v402 = vld [vmem:[%s0] sm:$0xf]
        %vm403 = vcmask 130048
        %v405 = vsel %vm403, %v402, 0
        %407 = vmatprep.subr.mxu0 0.0
        %408 = vmatpush1.msra.mxu0 %v400
        %409 = vmatprep.subr.mxu0 0.0
        %410 = vmatpush1.msra.mxu0 %v401
        %411 = vmatprep.subr.mxu0 0.0
        %412 = vmatpush1.msra.mxu0 0.0
        %413 = vmatprep.subr.mxu0 0.0
        %414 = vmatpush1.msra.mxu0 0.0
        %415 = vmatprep.subr.mxu0 0.0
        %416 = vmatpush1.msra.mxu0 0.0
        %417 = vmatprep.subr.mxu0 0.0
        %418 = vmatpush1.msra.mxu0 0.0
        %419 = vmatprep.subr.mxu0 0.0
        %420 = vmatpush1.msra.mxu0 0.0
        %421 = vmatprep.subr.mxu0 0.0
        %422 = vmatpush1.msra.mxu0 0.0
        %423 = vmatprep.subr.mxu0 0.0
        %424 = vmatpush1.msra.mxu0 0.0
        %425 = vmatprep.subr.mxu0 0.0
        %426 = vmatpush1.msra.mxu0 0.0
        %427 = vmatprep.subr.mxu0 0.0
        %428 = vmatpush1.msra.mxu0 0.0
        %429 = vmatprep.subr.mxu0 0.0
        %430 = vmatpush1.msra.mxu0 0.0
        %431 = vmatprep.subr.mxu0 0.0
        %432 = vmatpush1.msra.mxu0 0.0
        %433 = vmatprep.subr.mxu0 0.0
        %434 = vmatpush1.msra.mxu0 0.0
        %435 = vmatprep.subr.mxu0 0.0
        %436 = vmatpush1.msra.mxu0 0.0
        %437 = vmatprep.subr.mxu0 0.0
        %438 = vmatpush1.msra.mxu0 0.0
        %439 = vmatprep.subr.mxu0 0.0
        %440 = vmatpush1.msra.mxu0 0.0
        %441 = vmatprep.subr.mxu0 0.0
        %442 = vmatpush1.msra.mxu0 0.0
        %443 = vmatprep.subr.mxu0 0.0
        %444 = vmatpush1.msra.mxu0 0.0
        %445 = vmatprep.subr.mxu0 0.0
        %446 = vmatpush1.msra.mxu0 0.0
        %447 = vmatprep.subr.mxu0 0.0
        %448 = vmatpush1.msra.mxu0 0.0
        %449 = vmatprep.subr.mxu0 0.0
        %450 = vmatpush1.msra.mxu0 0.0
        %451 = vmatprep.subr.mxu0 0.0
        %452 = vmatpush1.msra.mxu0 0.0
        %453 = vmatprep.subr.mxu0 0.0
        %454 = vmatpush1.msra.mxu0 0.0
        %455 = vmatprep.subr.mxu0 0.0
        %456 = vmatpush1.msra.mxu0 0.0
        %457 = vmatprep.subr.mxu0 0.0
        %458 = vmatpush1.msra.mxu0 0.0
        %459 = vmatprep.subr.mxu0 0.0
        %460 = vmatpush1.msra.mxu0 0.0
        %461 = vmatprep.subr.mxu0 0.0
        %462 = vmatpush1.msra.mxu0 0.0
        %463 = vmatprep.subr.mxu0 0.0
        %464 = vmatpush1.msra.mxu0 0.0
        %465 = vmatprep.subr.mxu0 0.0
        %466 = vmatpush1.msra.mxu0 0.0
        %467 = vmatprep.subr.mxu0 0.0
        %468 = vmatpush1.msra.mxu0 0.0
        %469 = vmatprep.subr.mxu0 0.0
        %470 = vmatpush1.msra.mxu0 0.0
        %471 = vmatprep.mubr.f32.mxu0 0.0
        %472 = vmatmul.mubr.f32.gmra.mrb[0].mxu0 %v405
        %v473 = vpop.f32.mrb[0].mxu0
        %v474 = vadd.f32 0.0, %v473
        %v475 = vpop.f32.mrb[0].mxu0
        %476 = vdwg.mxu0
        %v477 = vld [vmem:[%s1] sm:$0xff]
        %v478 = vld [vmem:[%s1 + $0x8] sm:$0xff]
        %v480 = vsel %vm403, %v474, 0
        %482 = vmatprep.subr.mxu0 0.0
        %483 = vmatpush1.msra.mxu0 %v477
        %484 = vmatprep.subr.mxu0 0.0
        %485 = vmatpush1.msra.mxu0 %v478
        %486 = vmatprep.subr.mxu0 0.0
        %487 = vmatpush1.msra.mxu0 0.0
        %488 = vmatprep.subr.mxu0 0.0
        %489 = vmatpush1.msra.mxu0 0.0
        %490 = vmatprep.subr.mxu0 0.0
        %491 = vmatpush1.msra.mxu0 0.0
        %492 = vmatprep.subr.mxu0 0.0
        %493 = vmatpush1.msra.mxu0 0.0
        %494 = vmatprep.subr.mxu0 0.0
        %495 = vmatpush1.msra.mxu0 0.0
        %496 = vmatprep.subr.mxu0 0.0
        %497 = vmatpush1.msra.mxu0 0.0
        %498 = vmatprep.subr.mxu0 0.0
        %499 = vmatpush1.msra.mxu0 0.0
        %500 = vmatprep.subr.mxu0 0.0
        %501 = vmatpush1.msra.mxu0 0.0
        %502 = vmatprep.subr.mxu0 0.0
        %503 = vmatpush1.msra.mxu0 0.0
        %504 = vmatprep.subr.mxu0 0.0
        %505 = vmatpush1.msra.mxu0 0.0
        %506 = vmatprep.subr.mxu0 0.0
        %507 = vmatpush1.msra.mxu0 0.0
        %508 = vmatprep.subr.mxu0 0.0
        %509 = vmatpush1.msra.mxu0 0.0
        %510 = vmatprep.subr.mxu0 0.0
        %511 = vmatpush1.msra.mxu0 0.0
        %512 = vmatprep.subr.mxu0 0.0
        %513 = vmatpush1.msra.mxu0 0.0
        %514 = vmatprep.subr.mxu0 0.0
        %515 = vmatpush1.msra.mxu0 0.0
        %516 = vmatprep.subr.mxu0 0.0
        %517 = vmatpush1.msra.mxu0 0.0
        %518 = vmatprep.subr.mxu0 0.0
        %519 = vmatpush1.msra.mxu0 0.0
        %520 = vmatprep.subr.mxu0 0.0
        %521 = vmatpush1.msra.mxu0 0.0
        %522 = vmatprep.subr.mxu0 0.0
        %523 = vmatpush1.msra.mxu0 0.0
        %524 = vmatprep.subr.mxu0 0.0
        %525 = vmatpush1.msra.mxu0 0.0
        %526 = vmatprep.subr.mxu0 0.0
        %527 = vmatpush1.msra.mxu0 0.0
        %528 = vmatprep.subr.mxu0 0.0
        %529 = vmatpush1.msra.mxu0 0.0
        %530 = vmatprep.subr.mxu0 0.0
        %531 = vmatpush1.msra.mxu0 0.0
        %532 = vmatprep.subr.mxu0 0.0
        %533 = vmatpush1.msra.mxu0 0.0
        %534 = vmatprep.subr.mxu0 0.0
        %535 = vmatpush1.msra.mxu0 0.0
        %536 = vmatprep.subr.mxu0 0.0
        %537 = vmatpush1.msra.mxu0 0.0
        %538 = vmatprep.subr.mxu0 0.0
        %539 = vmatpush1.msra.mxu0 0.0
        %540 = vmatprep.subr.mxu0 0.0
        %541 = vmatpush1.msra.mxu0 0.0
        %542 = vmatprep.subr.mxu0 0.0
        %543 = vmatpush1.msra.mxu0 0.0
        %544 = vmatprep.subr.mxu0 0.0
        %545 = vmatpush1.msra.mxu0 0.0
        %546 = vmatprep.mubr.f32.mxu0 0.0
        %547 = vmatmul.mubr.f32.gmra.mrb[0].mxu0 %v480
        %v548 = vpop.f32.mrb[0].mxu0
        %v549 = vadd.f32 0.0, %v548
        %v550 = vpop.f32.mrb[0].mxu0
        %551 = vdwg.mxu0
        %v552 = vmul.f32 %v549, 0.0625
        %v553 = vld [vmem:[%s4] sm:$0xf]
        %vm554 = vcmask 31744
        %v556 = vsel %vm554, %v552, 0
        %vm558 = vcmask 1043456
        %v560 = vsel %vm558, %v553, 0
        %562 = vmatprep.subr.mxu0 0.0
        %563 = vmatpush1.msra.mxu0 %v560
        %564 = vmatprep.subr.mxu0 0.0
        %565 = vmatpush1.msra.mxu0 0.0
        %566 = vmatprep.subr.mxu0 0.0
        %567 = vmatpush1.msra.mxu0 0.0
        %568 = vmatprep.subr.mxu0 0.0
        %569 = vmatpush1.msra.mxu0 0.0
        %570 = vmatprep.subr.mxu0 0.0
        %571 = vmatpush1.msra.mxu0 0.0
        %572 = vmatprep.subr.mxu0 0.0
        %573 = vmatpush1.msra.mxu0 0.0
        %574 = vmatprep.subr.mxu0 0.0
        %575 = vmatpush1.msra.mxu0 0.0
        %576 = vmatprep.subr.mxu0 0.0
        %577 = vmatpush1.msra.mxu0 0.0
        %578 = vmatprep.subr.mxu0 0.0
        %579 = vmatpush1.msra.mxu0 0.0
        %580 = vmatprep.subr.mxu0 0.0
        %581 = vmatpush1.msra.mxu0 0.0
        %582 = vmatprep.subr.mxu0 0.0
        %583 = vmatpush1.msra.mxu0 0.0
        %584 = vmatprep.subr.mxu0 0.0
        %585 = vmatpush1.msra.mxu0 0.0
        %586 = vmatprep.subr.mxu0 0.0
        %587 = vmatpush1.msra.mxu0 0.0
        %588 = vmatprep.subr.mxu0 0.0
        %589 = vmatpush1.msra.mxu0 0.0
        %590 = vmatprep.subr.mxu0 0.0
        %591 = vmatpush1.msra.mxu0 0.0
        %592 = vmatprep.subr.mxu0 0.0
        %593 = vmatpush1.msra.mxu0 0.0
        %594 = vmatprep.subr.mxu0 0.0
        %595 = vmatpush1.msra.mxu0 0.0
        %596 = vmatprep.subr.mxu0 0.0
        %597 = vmatpush1.msra.mxu0 0.0
        %598 = vmatprep.subr.mxu0 0.0
        %599 = vmatpush1.msra.mxu0 0.0
        %600 = vmatprep.subr.mxu0 0.0
        %601 = vmatpush1.msra.mxu0 0.0
        %602 = vmatprep.subr.mxu0 0.0
        %603 = vmatpush1.msra.mxu0 0.0
        %604 = vmatprep.subr.mxu0 0.0
        %605 = vmatpush1.msra.mxu0 0.0
        %606 = vmatprep.subr.mxu0 0.0
        %607 = vmatpush1.msra.mxu0 0.0
        %608 = vmatprep.subr.mxu0 0.0
        %609 = vmatpush1.msra.mxu0 0.0
        %610 = vmatprep.subr.mxu0 0.0
        %611 = vmatpush1.msra.mxu0 0.0
        %612 = vmatprep.subr.mxu0 0.0
        %613 = vmatpush1.msra.mxu0 0.0
        %614 = vmatprep.subr.mxu0 0.0
        %615 = vmatpush1.msra.mxu0 0.0
        %616 = vmatprep.subr.mxu0 0.0
        %617 = vmatpush1.msra.mxu0 0.0
        %618 = vmatprep.subr.mxu0 0.0
        %619 = vmatpush1.msra.mxu0 0.0
        %620 = vmatprep.subr.mxu0 0.0
        %621 = vmatpush1.msra.mxu0 0.0
        %622 = vmatprep.subr.mxu0 0.0
        %623 = vmatpush1.msra.mxu0 0.0
        %624 = vmatprep.subr.mxu0 0.0
        %625 = vmatpush1.msra.mxu0 0.0
        %626 = vmatprep.mubr.f32.mxu0 0.0
        %627 = vmatmul.mubr.f32.gmra.mrb[0].mxu0 %v556
        %v628 = vpop.f32.mrb[0].mxu0
        %v629 = vadd.f32 0.0, %v628
        %v630 = vpop.f32.mrb[0].mxu0
        %631 = vdwg.mxu0
        %v632 = vsub.f32 %v552, %v629
        %v633 = vld [vmem:[%s5] sm:$0xf]
        %v635 = vsel %vm558, %v633, 0
        %637 = vmatprep.subr.mxu0 0.0
        %638 = vmatpush1.msra.mxu0 %v635
        %639 = vmatprep.subr.mxu0 0.0
        %640 = vmatpush1.msra.mxu0 0.0
        %641 = vmatprep.subr.mxu0 0.0
        %642 = vmatpush1.msra.mxu0 0.0
        %643 = vmatprep.subr.mxu0 0.0
        %644 = vmatpush1.msra.mxu0 0.0
        %645 = vmatprep.subr.mxu0 0.0
        %646 = vmatpush1.msra.mxu0 0.0
        %647 = vmatprep.subr.mxu0 0.0
        %648 = vmatpush1.msra.mxu0 0.0
        %649 = vmatprep.subr.mxu0 0.0
        %650 = vmatpush1.msra.mxu0 0.0
        %651 = vmatprep.subr.mxu0 0.0
        %652 = vmatpush1.msra.mxu0 0.0
        %653 = vmatprep.subr.mxu0 0.0
        %654 = vmatpush1.msra.mxu0 0.0
        %655 = vmatprep.subr.mxu0 0.0
        %656 = vmatpush1.msra.mxu0 0.0
        %657 = vmatprep.subr.mxu0 0.0
        %658 = vmatpush1.msra.mxu0 0.0
        %659 = vmatprep.subr.mxu0 0.0
        %660 = vmatpush1.msra.mxu0 0.0
        %661 = vmatprep.subr.mxu0 0.0
        %662 = vmatpush1.msra.mxu0 0.0
        %663 = vmatprep.subr.mxu0 0.0
        %664 = vmatpush1.msra.mxu0 0.0
        %665 = vmatprep.subr.mxu0 0.0
        %666 = vmatpush1.msra.mxu0 0.0
        %667 = vmatprep.subr.mxu0 0.0
        %668 = vmatpush1.msra.mxu0 0.0
        %669 = vmatprep.subr.mxu0 0.0
        %670 = vmatpush1.msra.mxu0 0.0
        %671 = vmatprep.subr.mxu0 0.0
        %672 = vmatpush1.msra.mxu0 0.0
        %673 = vmatprep.subr.mxu0 0.0
        %674 = vmatpush1.msra.mxu0 0.0
        %675 = vmatprep.subr.mxu0 0.0
        %676 = vmatpush1.msra.mxu0 0.0
        %677 = vmatprep.subr.mxu0 0.0
        %678 = vmatpush1.msra.mxu0 0.0
        %679 = vmatprep.subr.mxu0 0.0
        %680 = vmatpush1.msra.mxu0 0.0
        %681 = vmatprep.subr.mxu0 0.0
        %682 = vmatpush1.msra.mxu0 0.0
        %683 = vmatprep.subr.mxu0 0.0
        %684 = vmatpush1.msra.mxu0 0.0
        %685 = vmatprep.subr.mxu0 0.0
        %686 = vmatpush1.msra.mxu0 0.0
        %687 = vmatprep.subr.mxu0 0.0
        %688 = vmatpush1.msra.mxu0 0.0
        %689 = vmatprep.subr.mxu0 0.0
        %690 = vmatpush1.msra.mxu0 0.0
        %691 = vmatprep.subr.mxu0 0.0
        %692 = vmatpush1.msra.mxu0 0.0
        %693 = vmatprep.subr.mxu0 0.0
        %694 = vmatpush1.msra.mxu0 0.0
        %695 = vmatprep.subr.mxu0 0.0
        %696 = vmatpush1.msra.mxu0 0.0
        %697 = vmatprep.subr.mxu0 0.0
        %698 = vmatpush1.msra.mxu0 0.0
        %699 = vmatprep.subr.mxu0 0.0
        %700 = vmatpush1.msra.mxu0 0.0
        %701 = vmatprep.mubr.f32.mxu0 0.0
        %702 = vmatmul.mubr.f32.gmra.mrb[0].mxu0 %v556
        %v703 = vpop.f32.mrb[0].mxu0
        %v704 = vadd.f32 0.0, %v703
        %v705 = vpop.f32.mrb[0].mxu0
        %706 = vdwg.mxu0
        %v707 = vsub.f32 %v552, %v704
        %v708 = vld [vmem:[%s2] sm:$0xf]
        %v710 = vsel %vm554, %v708, 0
        %v712 = vsel %vm558, %v552, 0
        %714 = vmatprep.subr.mxu0 0.0
        %715 = vmatpush1.msra.mxu0 %v712
        %716 = vmatprep.subr.mxu0 0.0
        %717 = vmatpush1.msra.mxu0 0.0
        %718 = vmatprep.subr.mxu0 0.0
        %719 = vmatpush1.msra.mxu0 0.0
        %720 = vmatprep.subr.mxu0 0.0
        %721 = vmatpush1.msra.mxu0 0.0
        %722 = vmatprep.subr.mxu0 0.0
        %723 = vmatpush1.msra.mxu0 0.0
        %724 = vmatprep.subr.mxu0 0.0
        %725 = vmatpush1.msra.mxu0 0.0
        %726 = vmatprep.subr.mxu0 0.0
        %727 = vmatpush1.msra.mxu0 0.0
        %728 = vmatprep.subr.mxu0 0.0
        %729 = vmatpush1.msra.mxu0 0.0
        %730 = vmatprep.subr.mxu0 0.0
        %731 = vmatpush1.msra.mxu0 0.0
        %732 = vmatprep.subr.mxu0 0.0
        %733 = vmatpush1.msra.mxu0 0.0
        %734 = vmatprep.subr.mxu0 0.0
        %735 = vmatpush1.msra.mxu0 0.0
        %736 = vmatprep.subr.mxu0 0.0
        %737 = vmatpush1.msra.mxu0 0.0
        %738 = vmatprep.subr.mxu0 0.0
        %739 = vmatpush1.msra.mxu0 0.0
        %740 = vmatprep.subr.mxu0 0.0
        %741 = vmatpush1.msra.mxu0 0.0
        %742 = vmatprep.subr.mxu0 0.0
        %743 = vmatpush1.msra.mxu0 0.0
        %744 = vmatprep.subr.mxu0 0.0
        %745 = vmatpush1.msra.mxu0 0.0
        %746 = vmatprep.subr.mxu0 0.0
        %747 = vmatpush1.msra.mxu0 0.0
        %748 = vmatprep.subr.mxu0 0.0
        %749 = vmatpush1.msra.mxu0 0.0
        %750 = vmatprep.subr.mxu0 0.0
        %751 = vmatpush1.msra.mxu0 0.0
        %752 = vmatprep.subr.mxu0 0.0
        %753 = vmatpush1.msra.mxu0 0.0
        %754 = vmatprep.subr.mxu0 0.0
        %755 = vmatpush1.msra.mxu0 0.0
        %756 = vmatprep.subr.mxu0 0.0
        %757 = vmatpush1.msra.mxu0 0.0
        %758 = vmatprep.subr.mxu0 0.0
        %759 = vmatpush1.msra.mxu0 0.0
        %760 = vmatprep.subr.mxu0 0.0
        %761 = vmatpush1.msra.mxu0 0.0
        %762 = vmatprep.subr.mxu0 0.0
        %763 = vmatpush1.msra.mxu0 0.0
        %764 = vmatprep.subr.mxu0 0.0
        %765 = vmatpush1.msra.mxu0 0.0
        %766 = vmatprep.subr.mxu0 0.0
        %767 = vmatpush1.msra.mxu0 0.0
        %768 = vmatprep.subr.mxu0 0.0
        %769 = vmatpush1.msra.mxu0 0.0
        %770 = vmatprep.subr.mxu0 0.0
        %771 = vmatpush1.msra.mxu0 0.0
        %772 = vmatprep.subr.mxu0 0.0
        %773 = vmatpush1.msra.mxu0 0.0
        %774 = vmatprep.subr.mxu0 0.0
        %775 = vmatpush1.msra.mxu0 0.0
        %776 = vmatprep.subr.mxu0 0.0
        %777 = vmatpush1.msra.mxu0 0.0
        %778 = vmatprep.mubr.f32.mxu0 0.0
        %779 = vmatmul.mubr.f32.gmra.mrb[0].mxu0 %v710
        %v780 = vpop.f32.mrb[0].mxu0
        %v781 = vadd.f32 0.0, %v780
        %v782 = vpop.f32.mrb[0].mxu0
        %783 = vdwg.mxu0
        %v784 = vsub.f32 %v552, %v781
        %v785 = vld [vmem:[%s3] sm:$0xf]
        %v787 = vsel %vm554, %v785, 0
        %789 = vmatprep.subr.mxu0 0.0
        %790 = vmatpush1.msra.mxu0 %v712
        %791 = vmatprep.subr.mxu0 0.0
        %792 = vmatpush1.msra.mxu0 0.0
        %793 = vmatprep.subr.mxu0 0.0
        %794 = vmatpush1.msra.mxu0 0.0
        %795 = vmatprep.subr.mxu0 0.0
        %796 = vmatpush1.msra.mxu0 0.0
        %797 = vmatprep.subr.mxu0 0.0
        %798 = vmatpush1.msra.mxu0 0.0
        %799 = vmatprep.subr.mxu0 0.0
        %800 = vmatpush1.msra.mxu0 0.0
        %801 = vmatprep.subr.mxu0 0.0
        %802 = vmatpush1.msra.mxu0 0.0
        %803 = vmatprep.subr.mxu0 0.0
        %804 = vmatpush1.msra.mxu0 0.0
        %805 = vmatprep.subr.mxu0 0.0
        %806 = vmatpush1.msra.mxu0 0.0
        %807 = vmatprep.subr.mxu0 0.0
        %808 = vmatpush1.msra.mxu0 0.0
        %809 = vmatprep.subr.mxu0 0.0
        %810 = vmatpush1.msra.mxu0 0.0
        %811 = vmatprep.subr.mxu0 0.0
        %812 = vmatpush1.msra.mxu0 0.0
        %813 = vmatprep.subr.mxu0 0.0
        %814 = vmatpush1.msra.mxu0 0.0
        %815 = vmatprep.subr.mxu0 0.0
        %816 = vmatpush1.msra.mxu0 0.0
        %817 = vmatprep.subr.mxu0 0.0
        %818 = vmatpush1.msra.mxu0 0.0
        %819 = vmatprep.subr.mxu0 0.0
        %820 = vmatpush1.msra.mxu0 0.0
        %821 = vmatprep.subr.mxu0 0.0
        %822 = vmatpush1.msra.mxu0 0.0
        %823 = vmatprep.subr.mxu0 0.0
        %824 = vmatpush1.msra.mxu0 0.0
        %825 = vmatprep.subr.mxu0 0.0
        %826 = vmatpush1.msra.mxu0 0.0
        %827 = vmatprep.subr.mxu0 0.0
        %828 = vmatpush1.msra.mxu0 0.0
        %829 = vmatprep.subr.mxu0 0.0
        %830 = vmatpush1.msra.mxu0 0.0
        %831 = vmatprep.subr.mxu0 0.0
        %832 = vmatpush1.msra.mxu0 0.0
        %833 = vmatprep.subr.mxu0 0.0
        %834 = vmatpush1.msra.mxu0 0.0
        %835 = vmatprep.subr.mxu0 0.0
        %836 = vmatpush1.msra.mxu0 0.0
        %837 = vmatprep.subr.mxu0 0.0
        %838 = vmatpush1.msra.mxu0 0.0
        %839 = vmatprep.subr.mxu0 0.0
        %840 = vmatpush1.msra.mxu0 0.0
        %841 = vmatprep.subr.mxu0 0.0
        %842 = vmatpush1.msra.mxu0 0.0
        %843 = vmatprep.subr.mxu0 0.0
        %844 = vmatpush1.msra.mxu0 0.0
        %845 = vmatprep.subr.mxu0 0.0
        %846 = vmatpush1.msra.mxu0 0.0
        %847 = vmatprep.subr.mxu0 0.0
        %848 = vmatpush1.msra.mxu0 0.0
        %849 = vmatprep.subr.mxu0 0.0
        %850 = vmatpush1.msra.mxu0 0.0
        %851 = vmatprep.subr.mxu0 0.0
        %852 = vmatpush1.msra.mxu0 0.0
        %853 = vmatprep.mubr.f32.mxu0 0.0
        %854 = vmatmul.mubr.f32.gmra.mrb[0].mxu0 %v787
        %v855 = vpop.f32.mrb[0].mxu0
        %v856 = vadd.f32 0.0, %v855
        %v857 = vpop.f32.mrb[0].mxu0
        %858 = vdwg.mxu0
        %v859 = vsub.f32 %v552, %v856
        %v860 = vmul.f32 %v632, %v632
        %v861 = vmul.f32 %v707, %v707
        %v862 = vadd.f32 %v860, %v861
        %v863 = vmul.f32 %v784, %v784
        %v864 = vadd.f32 %v862, %v863
        %v865 = vmul.f32 %v859, %v859
        %v866 = vadd.f32 %v864, %v865
        %vm867 = vcmask 27648
        %868 = vst.msk [vmem:[%s363] sm:$0xf] %vm867, %v866
        %s869 = sand.u32 %s214, 1
        %s870 = scalar_lea.sflag [#allocation4], %s869
        %s871 = sand.u32 %s214, 1
        %s872 = smul.addr %s871, 4
        %s873 = scalar_lea.vmem [#allocation7], %s872
        // Predicated region
        $region61: #{tpu_custom_call.1} parent=51 // pred_check
          %p874 = pneg %p224
        $region62: #{tpu_custom_call.1} parent=51 // pred_check_branch
          %876 = sbr.rel (%p874) target = $region64
        $region63: #{tpu_custom_call.1} parent=51 // pred_region
          %s878 = ssub.s32 64, 64
          %879 = vsyncadd %s870, %s878
          %s880 = smul.addr %s28, 64
          %s881 = scalar_lea.hbm %s8, %s880
          %s883 = sshll.u32 %s873, 4
          %s884 = int_to_ptr.vmem [resolvable:$true] %s883
          %886 = dma.vmem_to_hbm [thread:$0]  %s884, 64, %s881, %s870
        $region64: #{tpu_custom_call.1} parent=51 // pred_fallthru
          _
      $region52: #{tpu_custom_call.1} parent=5 // pred_fallthru
        _
      %p887 = scmp.le.s32.totalorder 2, %s23
      // Predicated region
      $region65: #{tpu_custom_call.1} parent=5 // pred_check
        %p888 = pneg %p887
      $region66: #{tpu_custom_call.1} parent=5 // pred_check_branch
        %890 = sbr.rel (%p888) target = $region68
      $region67: #{tpu_custom_call.1} parent=5 // pred_region
        %s891 = ssub.s32 %s23, 2
        // Predicated region
        $region69: #{tpu_custom_call.1} parent=67 // pred_check
          %p892 = pneg %p230
        $region70: #{tpu_custom_call.1} parent=67 // pred_check_branch
          %894 = sbr.rel (%p892) target = $region72
        $region71: #{tpu_custom_call.1} parent=67 // pred_region
          %s895 = sand.u32 %s215, 1
          %s896 = scalar_lea.sflag [#allocation4], %s895
          %s897 = sand.u32 %s215, 1
          %s898 = smul.addr %s897, 4
          %s899 = scalar_lea.vmem [#allocation7], %s898
          %900 = dma.done %s896, 64
        $region72: #{tpu_custom_call.1} parent=67 // pred_fallthru
          _
      $region68: #{tpu_custom_call.1} parent=5 // pred_fallthru
        _
    $region6: #{tpu_custom_call.1} parent=1 // loop_footer
      %s27 = sadd.s32 1, %s23
    $region7: #{tpu_custom_call.1} parent=1 // loop_footer_branch
      %22 = sbr.rel target = $region3
    $region8: #{tpu_custom_call.1} parent=1 // loop_exit
      _
    %901 = vsyncpa [#allocation3], 1
    %s902 = scalar_lea.sflag [#allocation3], 1
    %903 = vsyncpa %s902, 1
    %904 = vsyncpa [#allocation6], 1
    %s905 = scalar_lea.sflag [#allocation6], 1
    %906 = vsyncpa %s905, 1
    %907 = vsyncpa [#allocation4], 1
    %s908 = scalar_lea.sflag [#allocation4], 1
    %909 = vsyncpa %s908, 1

</llo_original>
